<compile_context>
chip_gen: v5e
topology: v5e:2x2
jax: 0.10.0
libtpu: 0.0.40
codegen_flags: <defaults>
</compile_context>

<pallas_src>
import functools
import numpy as np

import jax
import jax.numpy as jnp
from jax import lax
from jax.experimental import pallas as pl
from jax.experimental.pallas import tpu as pltpu


# ----------------------------------------------------------------------------
# Host-side glue (identical to the reference numpy helper)
# ----------------------------------------------------------------------------
def generate_anchors(base_size=16, ratios=None, scales=None):
    if ratios is None:
        ratios = np.array([0.5, 1, 2])
    if scales is None:
        scales = np.array([2 ** 0, 2 ** (1.0 / 3.0), 2 ** (2.0 / 3.0)])
    num_anchors = len(ratios) * len(scales)
    anchors = np.zeros((num_anchors, 4))
    anchors[:, 2:] = base_size * np.tile(scales, (2, len(ratios))).T
    areas = anchors[:, 2] * anchors[:, 3]
    anchors[:, 2] = np.sqrt(areas / np.repeat(ratios, len(scales)))
    anchors[:, 3] = anchors[:, 2] * np.repeat(ratios, len(scales))
    anchors[:, 0::2] -= np.tile(anchors[:, 2] * 0.5, (2, 1)).T
    anchors[:, 1::2] -= np.tile(anchors[:, 3] * 0.5, (2, 1)).T
    return anchors


def _round_up(x, m):
    return ((x + m - 1) // m) * m


_SMEM_SPEC = pl.BlockSpec(memory_space=pltpu.MemorySpace.SMEM)


# ----------------------------------------------------------------------------
# Exact divmod without a VPU integer divide (review: avoid non-pow2 / runtime
# int div-mod).  Float-reciprocal estimate + integer +/-1 correction is exact
# for 0 <= x < 2**23 (anchor counts are far below that).
# ----------------------------------------------------------------------------
def _exact_divmod(x, div, inv_div):
    q = jnp.floor(x.astype(jnp.float32) * inv_div).astype(jnp.int32)
    r = x - q * div
    neg = r < 0
    q = jnp.where(neg, q - 1, q)
    r = jnp.where(neg, r + div, r)
    ovf = r >= div
    q = jnp.where(ovf, q + 1, q)
    r = jnp.where(ovf, r - div, r)
    return q, r


# ----------------------------------------------------------------------------
# One grid step = one lane-tile of `tile` anchors inside a single pyramid
# level.  All per-lane data is gathered from a small per-level table with one
# MXU matmul; everything else is slab-shaped VPU math.
# ----------------------------------------------------------------------------
def _anchors_tile_kernel(meta_ref, tab_ref, tilef_ref, *rest,
                         A, A_pad, T, C, B, tile, with_mask,
                         y_min, y_max, x_thr):
    if with_mask:
        calib_ref, anchors_ref, priors_ref, mask_ref = rest
    else:
        anchors_ref, priors_ref = rest
        calib_ref = mask_ref = None

    i = pl.program_id(0)
    lane_base = meta_ref[3 * i + 1]          # first in-level lane of this tile
    fw = meta_ref[3 * i + 2]                 # feature-map width of this level
    stride = tilef_ref[2 * i + 0]            # stride of this level (f32)
    inv_fw = tilef_ref[2 * i + 1]            # host-computed 1/fw (f32)

    tab = tab_ref[0]                         # [4 + T*2*C, A_pad] gather table

    # --- per-lane index math (anchor order: n = (y*fw + x)*A + a) -----------
    lane = lane_base + lax.broadcasted_iota(jnp.int32, (1, tile), 1)
    cell, a_idx = _exact_divmod(lane, A, 1.0 / A)
    gy, gx = _exact_divmod(cell, fw, inv_fw)
    sx = (gx.astype(jnp.float32) + 0.5) * stride
    sy = (gy.astype(jnp.float32) + 0.5) * stride

    # --- gather base coords + priors for every lane (one tiny MXU matmul) ---
    rows_a = lax.broadcasted_iota(jnp.int32, (A_pad, tile), 0)
    onehot = (rows_a == a_idx).astype(jnp.float32)          # exact 0/1 columns
    gathered = jnp.dot(tab, onehot, preferred_element_type=jnp.float32)

    # --- anchors: [4, tile] slab (rows x1, y1, x2, y2) -----------------------
    row4 = lax.broadcasted_iota(jnp.int32, (4, tile), 0)
    shift = jnp.where((row4 & 1) == 0, sx, sy)              # x rows / y rows
    coords = gathered[0:4, :] + shift
    anchors_ref[...] = coords

    # --- priors: [T*2*C, tile] slab, already gathered ------------------------
    priors_ref[...] = gathered[4:, :]

    # --- useful-anchor mask (running OR over object types) -------------------
    if with_mask:
        xc = (coords[0:1, :] + coords[2:3, :]) * 0.5
        yc = (coords[1:2, :] + coords[3:4, :]) * 0.5
        rows_b = []
        for b in range(B):                   # static python loops, B/T small
            fy_b = calib_ref[3 * b + 0]
            cy_b = calib_ref[3 * b + 1]
            cx_b = calib_ref[3 * b + 2]
            m = None
            for t in range(T):
                z = gathered[4 + t * 2 * C:5 + t * 2 * C, :]  # mean z channel
                # same op order as the torch reference: (c*z - p*z) / fy
                x3d = (xc * z - cx_b * z) / fy_b
                y3d = (yc * z - cy_b * z) / fy_b
                cond = (y3d > y_min) & (y3d < y_max) & (jnp.abs(x3d) < x_thr)
                m = cond if m is None else (m | cond)
            rows_b.append(jnp.where(m, 1, 0).astype(jnp.int32))
        mask_ref[...] = jnp.concatenate(rows_b, axis=0).astype(jnp.int8)


# ----------------------------------------------------------------------------
# Wrapper reproducing Anchors.forward (readConfigFile=1, anchor_prior=True,
# is_das=False, external_anchor_path='')
# ----------------------------------------------------------------------------
class AnchorsPallas:
    def __init__(self, pyramid_levels, strides, sizes, ratios, scales,
                 anchors_mean, anchors_std,
                 filter_y_threshold_min_max=(-0.5, 1.8),
                 filter_x_threshold=40.0,
                 lane_tile=2048):
        self.pyramid_levels = list(pyramid_levels)
        self.strides = [float(s) for s in strides]
        self.sizes = [float(s) for s in sizes]
        self.ratios = np.asarray(ratios, dtype=np.float64)
        self.scales = np.asarray(scales, dtype=np.float64)
        self.anchors_mean = np.asarray(anchors_mean, dtype=np.float32)
        self.anchors_std = np.asarray(anchors_std, dtype=np.float32)
        self.filter_y_threshold_min_max = filter_y_threshold_min_max
        self.filter_x_threshold = float(filter_x_threshold)
        assert lane_tile % 128 == 0
        self.lane_tile = int(lane_tile)

        # anchors2indexes broadcast rule of the torch module requires
        # len(sizes) == len(scales) (correctness concern from review).
        assert len(self.sizes) == len(self.scales), \
            "anchors2indexes assumes len(sizes) == len(scales)"

        T, S_grid, R_grid, C = self.anchors_mean.shape
        self.T, self.C = T, C
        self.A = len(self.ratios) * len(self.scales)
        self.A_pad = _round_up(max(self.A, 8), 8)           # sublane-aligned K
        self.R = 4 + T * 2 * C

        # ---- host precompute: size/ratio classification is shift-invariant,
        # so priors depend only on (level, base-anchor).  Bake base coords and
        # priors into one [R, A_pad] gather table per level.
        size_refs = np.asarray(self.sizes) * np.asarray(self.scales)
        ratio_refs = np.asarray(self.ratios)
        tables = []
        for idx in range(len(self.pyramid_levels)):
            base = generate_anchors(base_size=self.sizes[idx],
                                    ratios=self.ratios, scales=self.scales)
            s = np.sqrt((base[:, 2] - base[:, 0]) * (base[:, 3] - base[:, 1]))
            r = (base[:, 3] - base[:, 1]) / (base[:, 2] - base[:, 0])
            sizes_int = np.argmin(np.abs(s[:, None] - size_refs[None, :]), axis=1)
            ratio_int = np.argmin(np.abs(r[:, None] - ratio_refs[None, :]), axis=1)
            mean_cols = self.anchors_mean[:, sizes_int, ratio_int, :]   # [T,A,C]
            std_cols = self.anchors_std[:, sizes_int, ratio_int, :]
            prior_rows = np.stack([mean_cols.transpose(0, 2, 1),
                                   std_cols.transpose(0, 2, 1)], axis=1)  # [T,2,C,A]
            prior_rows = prior_rows.reshape(T * 2 * C, self.A)
            tab = np.concatenate([base.T.astype(np.float32),
                                  prior_rows.astype(np.float32)], axis=0)
            tab_pad = np.zeros((self.R, self.A_pad), np.float32)
            tab_pad[:, :self.A] = tab
            tables.append(tab_pad)
        self.tables = jnp.asarray(np.stack(tables, axis=0))   # [L, R, A_pad]

        self._plan_cache = {}

    # ---- per-image-shape plan: lane tile, per-tile metadata, level slices ---
    def _get_plan(self, H, W_img):
        key = (H, W_img)
        if key in self._plan_cache:
            return self._plan_cache[key]
        image_shape = np.array([H, W_img])
        image_shapes = [(image_shape + 2 ** x - 1) // (2 ** x)
                        for x in self.pyramid_levels]
        levels = []
        max_w = 0
        for idx in range(len(self.pyramid_levels)):
            fh, fw = int(image_shapes[idx][0]), int(image_shapes[idx][1])
            w = fh * fw * self.A
            levels.append((fh, fw, w))
            max_w = max(max_w, w)
        tile = max(128, min(self.lane_tile, _round_up(max_w, 128)))

        meta, tilef, slices = [], [], []
        off, n_total = 0, 0
        for idx, (fh, fw, w) in enumerate(levels):
            wp = _round_up(w, tile)
            for ti in range(wp // tile):
                meta += [idx, ti * tile, fw]
                tilef += [self.strides[idx], 1.0 / float(fw)]
            slices.append((off, w))
            off += wp
            n_total += w
        plan = (tile, len(tilef) // 2, off, n_total,
                np.asarray(meta, np.int32), np.asarray(tilef, np.float32),
                tuple(slices))
        self._plan_cache[key] = plan
        return plan

    def __call__(self, image, calibs=None, is_filtering=True):
        H, W_img = int(image.shape[2]), int(image.shape[3])
        tile, num_tiles, n_pad, n, meta_np, tilef_np, slices = self._get_plan(H, W_img)

        T, C, A, A_pad, R = self.T, self.C, self.A, self.A_pad, self.R
        have_calib = calibs is not None and len(calibs) > 0
        with_mask = have_calib and is_filtering
        B = len(calibs) if have_calib else 0

        meta = jnp.asarray(meta_np)
        tilef = jnp.asarray(tilef_np)

        kernel = functools.partial(
            _anchors_tile_kernel,
            A=A, A_pad=A_pad, T=T, C=C, B=B, tile=tile, with_mask=with_mask,
            y_min=float(self.filter_y_threshold_min_max[0]),
            y_max=float(self.filter_y_threshold_min_max[1]),
            x_thr=self.filter_x_threshold)

        tab_spec = pl.BlockSpec((1, R, A_pad),
                                lambda i, meta_ref: (meta_ref[3 * i], 0, 0))

        def lane_spec(rows):
            return pl.BlockSpec((rows, tile), lambda i, meta_ref: (0, i))

        in_specs = [tab_spec, _SMEM_SPEC] + ([_SMEM_SPEC] if with_mask else [])
        out_shapes = [jax.ShapeDtypeStruct((4, n_pad), jnp.float32),
                      jax.ShapeDtypeStruct((T * 2 * C, n_pad), jnp.float32)]
        out_specs = [lane_spec(4), lane_spec(T * 2 * C)]
        if with_mask:
            out_shapes.append(jax.ShapeDtypeStruct((B, n_pad), jnp.int8))
            out_specs.append(lane_spec(B))

        # per-step footprint (blocks + intermediates), generous double-buffer
        # factor; clamp well under the v7x 64 MiB physical ceiling.
        per_step = 4 * tile * (3 * R + A_pad + 32)
        vmem_limit = int(min(48 * 2 ** 20, max(16 * 2 ** 20, 8 * per_step)))
        cparams = pltpu.CompilerParams(dimension_semantics=("parallel",),
                                       vmem_limit_bytes=vmem_limit)

        grid_spec = pltpu.PrefetchScalarGridSpec(
            num_scalar_prefetch=1, grid=(num_tiles,),
            in_specs=in_specs, out_specs=tuple(out_specs))

        call = pl.pallas_call(kernel, out_shape=tuple(out_shapes),
                              grid_spec=grid_spec, compiler_params=cparams)

        if with_mask:
            P2 = np.asarray(calibs, np.float32)                        # [B,3,4]
            calib_flat = np.stack([P2[:, 1, 1], P2[:, 1, 2], P2[:, 0, 2]],
                                  axis=1).reshape(-1)                  # fy,cy,cx
            calib = jnp.asarray(calib_flat, jnp.float32)
            anchors_p, priors_p, mask_p = call(meta, self.tables, tilef, calib)
        else:
            anchors_p, priors_p = call(meta, self.tables, tilef)
            mask_p = None

        # Strip the per-level 128-aligned lane padding and convert back to the
        # reference conventions ([1,N,4] / [N,T,6,2]).  Pure XLA layout
        # plumbing; kernel stores stay lane-dense and aligned.
        anchors_c = jnp.concatenate([anchors_p[:, o:o + w] for (o, w) in slices],
                                    axis=1)
        priors_c = jnp.concatenate([priors_p[:, o:o + w] for (o, w) in slices],
                                   axis=1)
        anchors_out = anchors_c.T[None]                                # [1,N,4]
        anchor_mean_std = jnp.transpose(priors_c.reshape(T, 2, C, n),
                                        (3, 0, 2, 1))                  # [N,T,6,2]

        if not have_calib:
            return anchors_out

        if with_mask:
            mask_c = jnp.concatenate([mask_p[:, o:o + w] for (o, w) in slices],
                                     axis=1)
            useful_mask = mask_c.astype(jnp.bool_)
        else:
            useful_mask = jnp.ones((B, n), dtype=jnp.bool_)
        return anchors_out, useful_mask, anchor_mean_std


# ----------------------------------------------------------------------------
# Pure numpy reference (float32, same op order as the torch module)
# ----------------------------------------------------------------------------
def reference_forward(image_shape, pyramid_levels, strides, sizes, ratios,
                      scales, anchors_mean, anchors_std, P2, y_minmax, x_thr):
    ish = np.array(image_shape)
    image_shapes = [(ish + 2 ** x - 1) // (2 ** x) for x in pyramid_levels]
    all_anchors = np.zeros((0, 4), np.float32)
    for idx, _p in enumerate(pyramid_levels):
        base = generate_anchors(sizes[idx], np.asarray(ratios),
                                np.asarray(scales)).astype(np.float32)
        fh, fw = image_shapes[idx]
        sx = (np.arange(fw, dtype=np.float32) + np.float32(0.5)) * np.float32(strides[idx])
        sy = (np.arange(fh, dtype=np.float32) + np.float32(0.5)) * np.float32(strides[idx])
        SX, SY = np.meshgrid(sx, sy)
        shifts = np.vstack([SX.ravel(), SY.ravel(), SX.ravel(), SY.ravel()]).T
        shifted = (base[None, :, :] + shifts[:, None, :].astype(np.float32)
                   ).reshape(-1, 4)
        all_anchors = np.concatenate([all_anchors, shifted.astype(np.float32)], 0)

    w = all_anchors[:, 2] - all_anchors[:, 0]
    h = all_anchors[:, 3] - all_anchors[:, 1]
    s = np.sqrt(w * h)
    r = h / w
    size_refs = (np.array(sizes) * np.array(scales)).astype(np.float32)
    ratio_refs = np.asarray(ratios, np.float32)
    sizes_int = np.argmin(np.abs(s[:, None] - size_refs[None, :]), axis=1)
    ratio_int = np.argmin(np.abs(r[:, None] - ratio_refs[None, :]), axis=1)

    means = anchors_mean[:, sizes_int, ratio_int]     # [T, N, 6]
    stds = anchors_std[:, sizes_int, ratio_int]
    mean_std = np.stack([means, stds], axis=-1).transpose(1, 0, 2, 3)

    xc = (all_anchors[:, 0] + all_anchors[:, 2]) * np.float32(0.5)
    yc = (all_anchors[:, 1] + all_anchors[:, 3]) * np.float32(0.5)
    fy = P2[:, 1:2, 1:2]
    cy = P2[:, 1:2, 2:3]
    cx = P2[:, 0:1, 2:3]
    z = means[:, :, 0]
    x3d = (xc * z - cx * z) / fy
    y3d = (yc * z - cy * z) / fy
    mask = np.any((y3d > y_minmax[0]) & (y3d < y_minmax[1]) &
                  (np.abs(x3d) < x_thr), axis=1)
    return all_anchors[None], mask, mean_std


# ----------------------------------------------------------------------------
if __name__ == "__main__":
    # Small synthetic configuration (multi-level dense output).
    pyramid_levels = [3, 4]
    strides = [8.0, 16.0]
    sizes = [16.0, 32.0]
    ratios = [0.5, 1.0, 2.0]
    scales = [1.0, 2 ** 0.5]            # len(scales) == len(sizes), as the
                                        # torch anchors2indexes broadcast needs
    obj_types = ["Car", "Pedestrian"]   # T = 2
    T = len(obj_types)
    S_grid = len(scales) * len(pyramid_levels)
    R_grid = len(ratios)

    key = jax.random.PRNGKey(0)
    k_img, k_mean, k_std = jax.random.split(key, 3)

    # layout: NCHW, only H and W are used by the forward pass.
    image = jax.random.normal(k_img, (2, 3, 16, 16), dtype=jnp.float32)

    # Deterministic synthetic priors (stand-in for anchor_mean_*.npy files).
    anchors_mean = np.asarray(
        jax.random.uniform(k_mean, (T, S_grid, R_grid, 6),
                           minval=0.5, maxval=3.0), dtype=np.float32)
    anchors_std = np.asarray(
        jax.random.uniform(k_std, (T, S_grid, R_grid, 6),
                           minval=0.1, maxval=1.0), dtype=np.float32)

    # Deterministic synthetic calibration matrices P2 [B, 3, 4].
    P2 = np.array(
        [[[20.0, 0.0, 8.0, 0.0],
          [0.0, 20.0, 8.0, 0.0],
          [0.0, 0.0, 1.0, 0.0]],
         [[25.0, 0.0, 7.5, 1.0],
          [0.0, 25.0, 8.5, 2.0],
          [0.0, 0.0, 1.0, 0.0]]], dtype=np.float32)

    module = AnchorsPallas(pyramid_levels, strides, sizes, ratios, scales,
                           anchors_mean, anchors_std,
                           filter_y_threshold_min_max=(-0.5, 1.8),
                           filter_x_threshold=40.0)

    # Full path: anchors + useful mask + priors (single tiled pallas_call).
    anchors, useful_mask, anchor_mean_std = module(image, calibs=P2,
                                                   is_filtering=True)
    jax.block_until_ready((anchors, useful_mask, anchor_mean_std))

    # No-calib path (anchors only).
    anchors_only = module(image)
    jax.block_until_ready(anchors_only)

    # Verify against the float32 numpy reference.
    ref_anchors, ref_mask, ref_ms = reference_forward(
        (16, 16), pyramid_levels, strides, sizes, ratios, scales,
        anchors_mean, anchors_std, P2, (-0.5, 1.8), 40.0)

    assert anchors.shape == ref_anchors.shape
    assert useful_mask.shape == ref_mask.shape and useful_mask.dtype == jnp.bool_
    assert anchor_mean_std.shape == ref_ms.shape
    np.testing.assert_allclose(np.asarray(anchors), ref_anchors,
                               rtol=1e-5, atol=1e-5)
    np.testing.assert_allclose(np.asarray(anchors_only), ref_anchors,
                               rtol=1e-5, atol=1e-5)
    np.testing.assert_allclose(np.asarray(anchor_mean_std), ref_ms,
                               rtol=1e-5, atol=1e-5)
    assert np.array_equal(np.asarray(useful_mask), ref_mask)

    print("KERNEL_OK")
</pallas_src>

<mosaic_0001>
module attributes {stable_mosaic.version = 11 : i64} {
  func.func @_anchors_tile_kernel(%arg0: i32, %arg1: memref<6xi32, #tpu.memory_space<smem>>, %arg2: memref<1x28x8xf32, #tpu.memory_space<vmem>>, %arg3: memref<4xf32, #tpu.memory_space<smem>>, %arg4: memref<6xf32, #tpu.memory_space<smem>>, %arg5: memref<4x128xf32, #tpu.memory_space<vmem>>, %arg6: memref<24x128xf32, #tpu.memory_space<vmem>>, %arg7: memref<2x128xi8, #tpu.memory_space<vmem>>) attributes {dimension_semantics = [#tpu.dimension_semantics<parallel>], iteration_bounds = array<i64: 2>, scalar_prefetch = 1 : i64, scratch_operands = 0 : i64, tpu.core_type = #tpu.core_type<tc>, window_params = [{transform_indices = @transform_0, window_bounds = array<i64: 1, 28, 8>}, {transform_indices = @transform_1, window_bounds = array<i64: 4>}, {transform_indices = @transform_2, window_bounds = array<i64: 6>}, {transform_indices = @transform_3, window_bounds = array<i64: 4, 128>}, {transform_indices = @transform_4, window_bounds = array<i64: 24, 128>}, {transform_indices = @transform_5, window_bounds = array<i64: 2, 128>}]} {
    %c3_i32 = arith.constant 3 : i32
    %0 = arith.muli %c3_i32, %arg0 : i32
    %c1_i32 = arith.constant 1 : i32
    %1 = arith.addi %0, %c1_i32 : i32
    %2 = arith.index_cast %1 : i32 to index
    %3 = memref.load %arg1[%2] : memref<6xi32, #tpu.memory_space<smem>>
    %c3_i32_0 = arith.constant 3 : i32
    %4 = arith.muli %c3_i32_0, %arg0 : i32
    %c2_i32 = arith.constant 2 : i32
    %5 = arith.addi %4, %c2_i32 : i32
    %6 = arith.index_cast %5 : i32 to index
    %7 = memref.load %arg1[%6] : memref<6xi32, #tpu.memory_space<smem>>
    %c2_i32_1 = arith.constant 2 : i32
    %8 = arith.muli %c2_i32_1, %arg0 : i32
    %c0_i32 = arith.constant 0 : i32
    %9 = arith.addi %8, %c0_i32 : i32
    %10 = arith.index_cast %9 : i32 to index
    %11 = memref.load %arg3[%10] : memref<4xf32, #tpu.memory_space<smem>>
    %c2_i32_2 = arith.constant 2 : i32
    %12 = arith.muli %c2_i32_2, %arg0 : i32
    %c1_i32_3 = arith.constant 1 : i32
    %13 = arith.addi %12, %c1_i32_3 : i32
    %14 = arith.index_cast %13 : i32 to index
    %15 = memref.load %arg3[%14] : memref<4xf32, #tpu.memory_space<smem>>
    %c0 = arith.constant 0 : index
    %c0_4 = arith.constant 0 : index
    %c0_5 = arith.constant 0 : index
    %16 = vector.load %arg2[%c0, %c0_4, %c0_5] : memref<1x28x8xf32, #tpu.memory_space<vmem>>, vector<1x28x8xf32>
    %17 = vector.shape_cast %16 : vector<1x28x8xf32> to vector<28x8xf32>
    %18 = tpu.iota {dimensions = array<i32: 1>} : vector<1x128xi32>
    %19 = vector.broadcast %3 : i32 to vector<1x128xi32>
    %20 = arith.addi %19, %18 : vector<1x128xi32>
    %21 = arith.sitofp %20 : vector<1x128xi32> to vector<1x128xf32>
    %cst = arith.constant 0.166666672 : f32
    %22 = vector.broadcast %cst : f32 to vector<1x128xf32>
    %23 = arith.mulf %21, %22 : vector<1x128xf32>
    %24 = math.floor %23 : vector<1x128xf32>
    %25 = arith.fptosi %24 : vector<1x128xf32> to vector<1x128xi32>
    %c6_i32 = arith.constant 6 : i32
    %26 = vector.broadcast %c6_i32 : i32 to vector<1x128xi32>
    %27 = arith.muli %25, %26 : vector<1x128xi32>
    %28 = arith.subi %20, %27 : vector<1x128xi32>
    %c0_i32_6 = arith.constant 0 : i32
    %29 = vector.broadcast %c0_i32_6 : i32 to vector<1x128xi32>
    %30 = arith.cmpi slt, %28, %29 : vector<1x128xi32>
    %c1_i32_7 = arith.constant 1 : i32
    %31 = vector.broadcast %c1_i32_7 : i32 to vector<1x128xi32>
    %32 = arith.subi %25, %31 : vector<1x128xi32>
    %33 = arith.select %30, %32, %25 : vector<1x128xi1>, vector<1x128xi32>
    %c6_i32_8 = arith.constant 6 : i32
    %34 = vector.broadcast %c6_i32_8 : i32 to vector<1x128xi32>
    %35 = arith.addi %28, %34 : vector<1x128xi32>
    %36 = arith.select %30, %35, %28 : vector<1x128xi1>, vector<1x128xi32>
    %c6_i32_9 = arith.constant 6 : i32
    %37 = vector.broadcast %c6_i32_9 : i32 to vector<1x128xi32>
    %38 = arith.cmpi sge, %36, %37 : vector<1x128xi32>
    %c1_i32_10 = arith.constant 1 : i32
    %39 = vector.broadcast %c1_i32_10 : i32 to vector<1x128xi32>
    %40 = arith.addi %33, %39 : vector<1x128xi32>
    %41 = arith.select %38, %40, %33 : vector<1x128xi1>, vector<1x128xi32>
    %c6_i32_11 = arith.constant 6 : i32
    %42 = vector.broadcast %c6_i32_11 : i32 to vector<1x128xi32>
    %43 = arith.subi %36, %42 : vector<1x128xi32>
    %44 = arith.select %38, %43, %36 : vector<1x128xi1>, vector<1x128xi32>
    %45 = arith.sitofp %41 : vector<1x128xi32> to vector<1x128xf32>
    %46 = vector.broadcast %15 : f32 to vector<1x128xf32>
    %47 = arith.mulf %45, %46 : vector<1x128xf32>
    %48 = math.floor %47 : vector<1x128xf32>
    %49 = arith.fptosi %48 : vector<1x128xf32> to vector<1x128xi32>
    %50 = vector.broadcast %7 : i32 to vector<1x128xi32>
    %51 = arith.muli %49, %50 : vector<1x128xi32>
    %52 = arith.subi %41, %51 : vector<1x128xi32>
    %c0_i32_12 = arith.constant 0 : i32
    %53 = vector.broadcast %c0_i32_12 : i32 to vector<1x128xi32>
    %54 = arith.cmpi slt, %52, %53 : vector<1x128xi32>
    %c1_i32_13 = arith.constant 1 : i32
    %55 = vector.broadcast %c1_i32_13 : i32 to vector<1x128xi32>
    %56 = arith.subi %49, %55 : vector<1x128xi32>
    %57 = arith.select %54, %56, %49 : vector<1x128xi1>, vector<1x128xi32>
    %58 = vector.broadcast %7 : i32 to vector<1x128xi32>
    %59 = arith.addi %52, %58 : vector<1x128xi32>
    %60 = arith.select %54, %59, %52 : vector<1x128xi1>, vector<1x128xi32>
    %61 = vector.broadcast %7 : i32 to vector<1x128xi32>
    %62 = arith.cmpi sge, %60, %61 : vector<1x128xi32>
    %c1_i32_14 = arith.constant 1 : i32
    %63 = vector.broadcast %c1_i32_14 : i32 to vector<1x128xi32>
    %64 = arith.addi %57, %63 : vector<1x128xi32>
    %65 = arith.select %62, %64, %57 : vector<1x128xi1>, vector<1x128xi32>
    %66 = vector.broadcast %7 : i32 to vector<1x128xi32>
    %67 = arith.subi %60, %66 : vector<1x128xi32>
    %68 = arith.select %62, %67, %60 : vector<1x128xi1>, vector<1x128xi32>
    %69 = arith.sitofp %68 : vector<1x128xi32> to vector<1x128xf32>
    %cst_15 = arith.constant 5.000000e-01 : f32
    %70 = vector.broadcast %cst_15 : f32 to vector<1x128xf32>
    %71 = arith.addf %69, %70 : vector<1x128xf32>
    %72 = vector.broadcast %11 : f32 to vector<1x128xf32>
    %73 = arith.mulf %71, %72 : vector<1x128xf32>
    %74 = arith.sitofp %65 : vector<1x128xi32> to vector<1x128xf32>
    %cst_16 = arith.constant 5.000000e-01 : f32
    %75 = vector.broadcast %cst_16 : f32 to vector<1x128xf32>
    %76 = arith.addf %74, %75 : vector<1x128xf32>
    %77 = vector.broadcast %11 : f32 to vector<1x128xf32>
    %78 = arith.mulf %76, %77 : vector<1x128xf32>
    %79 = tpu.iota {dimensions = array<i32: 0>} : vector<8x128xi32>
    %80 = vector.broadcast %44 : vector<1x128xi32> to vector<8x128xi32>
    %81 = arith.cmpi eq, %79, %80 : vector<8x128xi32>
    %82 = arith.extui %81 : vector<8x128xi1> to vector<8x128xi32>
    %83 = arith.sitofp %82 : vector<8x128xi32> to vector<8x128xf32>
    %cst_17 = arith.constant dense<0.000000e+00> : vector<28x128xf32>
    %84 = tpu.matmul %17, %83, %cst_17 {dimension_numbers = #tpu.dot_dimension_numbers<[1], [0], [0], [1], [0, 0, 1, 1], [], []>} : vector<28x8xf32>, vector<8x128xf32>, vector<28x128xf32> -> vector<28x128xf32>
    %85 = tpu.iota {dimensions = array<i32: 0>} : vector<4x128xi32>
    %c1_i32_18 = arith.constant 1 : i32
    %86 = vector.broadcast %c1_i32_18 : i32 to vector<4x128xi32>
    %87 = arith.andi %85, %86 : vector<4x128xi32>
    %c0_i32_19 = arith.constant 0 : i32
    %88 = vector.broadcast %c0_i32_19 : i32 to vector<4x128xi32>
    %89 = arith.cmpi eq, %87, %88 : vector<4x128xi32>
    %90 = vector.shape_cast %73 : vector<1x128xf32> to vector<1x128xf32>
    %91 = vector.broadcast %90 : vector<1x128xf32> to vector<4x128xf32>
    %92 = vector.shape_cast %78 : vector<1x128xf32> to vector<1x128xf32>
    %93 = vector.broadcast %92 : vector<1x128xf32> to vector<4x128xf32>
    %94 = arith.select %89, %91, %93 : vector<4x128xi1>, vector<4x128xf32>
    %95 = vector.extract_strided_slice %84 {offsets = [0, 0], sizes = [4, 128], strides = [1, 1]} : vector<28x128xf32> to vector<4x128xf32>
    %96 = arith.addf %95, %94 : vector<4x128xf32>
    %c0_20 = arith.constant 0 : index
    %c0_21 = arith.constant 0 : index
    %97 = vector.load %arg5[%c0_20, %c0_21] : memref<4x128xf32, #tpu.memory_space<vmem>>, vector<4x128xf32>
    tpu.vector_store %arg5[%c0_20, %c0_21], %96 {strides = array<i32>} : memref<4x128xf32, #tpu.memory_space<vmem>>, vector<4x128xf32>,
    %98 = vector.extract_strided_slice %84 {offsets = [4, 0], sizes = [24, 128], strides = [1, 1]} : vector<28x128xf32> to vector<24x128xf32>
    %c0_22 = arith.constant 0 : index
    %c0_23 = arith.constant 0 : index
    %99 = vector.load %arg6[%c0_22, %c0_23] : memref<24x128xf32, #tpu.memory_space<vmem>>, vector<24x128xf32>
    tpu.vector_store %arg6[%c0_22, %c0_23], %98 {strides = array<i32>} : memref<24x128xf32, #tpu.memory_space<vmem>>, vector<24x128xf32>,
    %100 = vector.extract_strided_slice %96 {offsets = [0, 0], sizes = [1, 128], strides = [1, 1]} : vector<4x128xf32> to vector<1x128xf32>
    %101 = vector.extract_strided_slice %96 {offsets = [2, 0], sizes = [1, 128], strides = [1, 1]} : vector<4x128xf32> to vector<1x128xf32>
    %102 = arith.addf %100, %101 : vector<1x128xf32>
    %cst_24 = arith.constant 5.000000e-01 : f32
    %103 = vector.broadcast %cst_24 : f32 to vector<1x128xf32>
    %104 = arith.mulf %102, %103 : vector<1x128xf32>
    %105 = vector.extract_strided_slice %96 {offsets = [1, 0], sizes = [1, 128], strides = [1, 1]} : vector<4x128xf32> to vector<1x128xf32>
    %106 = vector.extract_strided_slice %96 {offsets = [3, 0], sizes = [1, 128], strides = [1, 1]} : vector<4x128xf32> to vector<1x128xf32>
    %107 = arith.addf %105, %106 : vector<1x128xf32>
    %cst_25 = arith.constant 5.000000e-01 : f32
    %108 = vector.broadcast %cst_25 : f32 to vector<1x128xf32>
    %109 = arith.mulf %107, %108 : vector<1x128xf32>
    %c0_26 = arith.constant 0 : index
    %110 = memref.load %arg4[%c0_26] : memref<6xf32, #tpu.memory_space<smem>>
    %c1 = arith.constant 1 : index
    %111 = memref.load %arg4[%c1] : memref<6xf32, #tpu.memory_space<smem>>
    %c2 = arith.constant 2 : index
    %112 = memref.load %arg4[%c2] : memref<6xf32, #tpu.memory_space<smem>>
    %113 = vector.extract_strided_slice %84 {offsets = [4, 0], sizes = [1, 128], strides = [1, 1]} : vector<28x128xf32> to vector<1x128xf32>
    %114 = arith.mulf %104, %113 : vector<1x128xf32>
    %115 = vector.broadcast %112 : f32 to vector<1x128xf32>
    %116 = arith.mulf %115, %113 : vector<1x128xf32>
    %117 = arith.subf %114, %116 : vector<1x128xf32>
    %118 = vector.broadcast %110 : f32 to vector<1x128xf32>
    %119 = arith.divf %117, %118 : vector<1x128xf32>
    %120 = arith.mulf %109, %113 : vector<1x128xf32>
    %121 = vector.broadcast %111 : f32 to vector<1x128xf32>
    %122 = arith.mulf %121, %113 : vector<1x128xf32>
    %123 = arith.subf %120, %122 : vector<1x128xf32>
    %124 = vector.broadcast %110 : f32 to vector<1x128xf32>
    %125 = arith.divf %123, %124 : vector<1x128xf32>
    %cst_27 = arith.constant -5.000000e-01 : f32
    %126 = vector.broadcast %cst_27 : f32 to vector<1x128xf32>
    %127 = arith.cmpf ogt, %125, %126 : vector<1x128xf32>
    %cst_28 = arith.constant 1.800000e+00 : f32
    %128 = vector.broadcast %cst_28 : f32 to vector<1x128xf32>
    %129 = arith.cmpf olt, %125, %128 : vector<1x128xf32>
    %130 = arith.andi %127, %129 : vector<1x128xi1>
    %131 = math.absf %119 : vector<1x128xf32>
    %cst_29 = arith.constant 4.000000e+01 : f32
    %132 = vector.broadcast %cst_29 : f32 to vector<1x128xf32>
    %133 = arith.cmpf olt, %131, %132 : vector<1x128xf32>
    %134 = arith.andi %130, %133 : vector<1x128xi1>
    %135 = vector.extract_strided_slice %84 {offsets = [16, 0], sizes = [1, 128], strides = [1, 1]} : vector<28x128xf32> to vector<1x128xf32>
    %136 = arith.mulf %104, %135 : vector<1x128xf32>
    %137 = vector.broadcast %112 : f32 to vector<1x128xf32>
    %138 = arith.mulf %137, %135 : vector<1x128xf32>
    %139 = arith.subf %136, %138 : vector<1x128xf32>
    %140 = vector.broadcast %110 : f32 to vector<1x128xf32>
    %141 = arith.divf %139, %140 : vector<1x128xf32>
    %142 = arith.mulf %109, %135 : vector<1x128xf32>
    %143 = vector.broadcast %111 : f32 to vector<1x128xf32>
    %144 = arith.mulf %143, %135 : vector<1x128xf32>
    %145 = arith.subf %142, %144 : vector<1x128xf32>
    %146 = vector.broadcast %110 : f32 to vector<1x128xf32>
    %147 = arith.divf %145, %146 : vector<1x128xf32>
    %cst_30 = arith.constant -5.000000e-01 : f32
    %148 = vector.broadcast %cst_30 : f32 to vector<1x128xf32>
    %149 = arith.cmpf ogt, %147, %148 : vector<1x128xf32>
    %cst_31 = arith.constant 1.800000e+00 : f32
    %150 = vector.broadcast %cst_31 : f32 to vector<1x128xf32>
    %151 = arith.cmpf olt, %147, %150 : vector<1x128xf32>
    %152 = arith.andi %149, %151 : vector<1x128xi1>
    %153 = math.absf %141 : vector<1x128xf32>
    %cst_32 = arith.constant 4.000000e+01 : f32
    %154 = vector.broadcast %cst_32 : f32 to vector<1x128xf32>
    %155 = arith.cmpf olt, %153, %154 : vector<1x128xf32>
    %156 = arith.andi %152, %155 : vector<1x128xi1>
    %157 = arith.ori %134, %156 : vector<1x128xi1>
    %c1_i32_33 = arith.constant 1 : i32
    %c0_i32_34 = arith.constant 0 : i32
    %158 = vector.broadcast %c1_i32_33 : i32 to vector<1x128xi32>
    %159 = vector.broadcast %c0_i32_34 : i32 to vector<1x128xi32>
    %160 = arith.select %157, %158, %159 : vector<1x128xi1>, vector<1x128xi32>
    %c3 = arith.constant 3 : index
    %161 = memref.load %arg4[%c3] : memref<6xf32, #tpu.memory_space<smem>>
    %c4 = arith.constant 4 : index
    %162 = memref.load %arg4[%c4] : memref<6xf32, #tpu.memory_space<smem>>
    %c5 = arith.constant 5 : index
    %163 = memref.load %arg4[%c5] : memref<6xf32, #tpu.memory_space<smem>>
    %164 = vector.extract_strided_slice %84 {offsets = [4, 0], sizes = [1, 128], strides = [1, 1]} : vector<28x128xf32> to vector<1x128xf32>
    %165 = arith.mulf %104, %164 : vector<1x128xf32>
    %166 = vector.broadcast %163 : f32 to vector<1x128xf32>
    %167 = arith.mulf %166, %164 : vector<1x128xf32>
    %168 = arith.subf %165, %167 : vector<1x128xf32>
    %169 = vector.broadcast %161 : f32 to vector<1x128xf32>
    %170 = arith.divf %168, %169 : vector<1x128xf32>
    %171 = arith.mulf %109, %164 : vector<1x128xf32>
    %172 = vector.broadcast %162 : f32 to vector<1x128xf32>
    %173 = arith.mulf %172, %164 : vector<1x128xf32>
    %174 = arith.subf %171, %173 : vector<1x128xf32>
    %175 = vector.broadcast %161 : f32 to vector<1x128xf32>
    %176 = arith.divf %174, %175 : vector<1x128xf32>
    %cst_35 = arith.constant -5.000000e-01 : f32
    %177 = vector.broadcast %cst_35 : f32 to vector<1x128xf32>
    %178 = arith.cmpf ogt, %176, %177 : vector<1x128xf32>
    %cst_36 = arith.constant 1.800000e+00 : f32
    %179 = vector.broadcast %cst_36 : f32 to vector<1x128xf32>
    %180 = arith.cmpf olt, %176, %179 : vector<1x128xf32>
    %181 = arith.andi %178, %180 : vector<1x128xi1>
    %182 = math.absf %170 : vector<1x128xf32>
    %cst_37 = arith.constant 4.000000e+01 : f32
    %183 = vector.broadcast %cst_37 : f32 to vector<1x128xf32>
    %184 = arith.cmpf olt, %182, %183 : vector<1x128xf32>
    %185 = arith.andi %181, %184 : vector<1x128xi1>
    %186 = vector.extract_strided_slice %84 {offsets = [16, 0], sizes = [1, 128], strides = [1, 1]} : vector<28x128xf32> to vector<1x128xf32>
    %187 = arith.mulf %104, %186 : vector<1x128xf32>
    %188 = vector.broadcast %163 : f32 to vector<1x128xf32>
    %189 = arith.mulf %188, %186 : vector<1x128xf32>
    %190 = arith.subf %187, %189 : vector<1x128xf32>
    %191 = vector.broadcast %161 : f32 to vector<1x128xf32>
    %192 = arith.divf %190, %191 : vector<1x128xf32>
    %193 = arith.mulf %109, %186 : vector<1x128xf32>
    %194 = vector.broadcast %162 : f32 to vector<1x128xf32>
    %195 = arith.mulf %194, %186 : vector<1x128xf32>
    %196 = arith.subf %193, %195 : vector<1x128xf32>
    %197 = vector.broadcast %161 : f32 to vector<1x128xf32>
    %198 = arith.divf %196, %197 : vector<1x128xf32>
    %cst_38 = arith.constant -5.000000e-01 : f32
    %199 = vector.broadcast %cst_38 : f32 to vector<1x128xf32>
    %200 = arith.cmpf ogt, %198, %199 : vector<1x128xf32>
    %cst_39 = arith.constant 1.800000e+00 : f32
    %201 = vector.broadcast %cst_39 : f32 to vector<1x128xf32>
    %202 = arith.cmpf olt, %198, %201 : vector<1x128xf32>
    %203 = arith.andi %200, %202 : vector<1x128xi1>
    %204 = math.absf %192 : vector<1x128xf32>
    %cst_40 = arith.constant 4.000000e+01 : f32
    %205 = vector.broadcast %cst_40 : f32 to vector<1x128xf32>
    %206 = arith.cmpf olt, %204, %205 : vector<1x128xf32>
    %207 = arith.andi %203, %206 : vector<1x128xi1>
    %208 = arith.ori %185, %207 : vector<1x128xi1>
    %c1_i32_41 = arith.constant 1 : i32
    %c0_i32_42 = arith.constant 0 : i32
    %209 = vector.broadcast %c1_i32_41 : i32 to vector<1x128xi32>
    %210 = vector.broadcast %c0_i32_42 : i32 to vector<1x128xi32>
    %211 = arith.select %208, %209, %210 : vector<1x128xi1>, vector<1x128xi32>
    %212 = tpu.concatenate %160, %211 in 0 : vector<1x128xi32>, vector<1x128xi32> -> vector<2x128xi32>
    %213 = arith.trunci %212 : vector<2x128xi32> to vector<2x128xi8>
    %c0_43 = arith.constant 0 : index
    %c0_44 = arith.constant 0 : index
    %214 = vector.load %arg7[%c0_43, %c0_44] : memref<2x128xi8, #tpu.memory_space<vmem>>, vector<2x128xi8>
    tpu.vector_store %arg7[%c0_43, %c0_44], %213 {strides = array<i32>} : memref<2x128xi8, #tpu.memory_space<vmem>>, vector<2x128xi8>,
    return
  }
  func.func @transform_0(%arg0: i32, %arg1: memref<6xi32, #tpu.memory_space<smem>>) -> (i32, i32, i32) {
    %c3_i32 = arith.constant 3 : i32
    %0 = arith.muli %c3_i32, %arg0 : i32
    %1 = arith.index_cast %0 : i32 to index
    %2 = memref.load %arg1[%1] : memref<6xi32, #tpu.memory_space<smem>>
    %c0_i32 = arith.constant 0 : i32
    %c0_i32_0 = arith.constant 0 : i32
    %c0_i32_1 = arith.constant 0 : i32
    return %2, %c0_i32, %c0_i32_0 : i32, i32, i32
  }
  func.func @transform_1(%arg0: i32, %arg1: memref<6xi32, #tpu.memory_space<smem>>) -> i32 {
    %c0_i32 = arith.constant 0 : i32
    %c0_i32_0 = arith.constant 0 : i32
    return %c0_i32 : i32
  }
  func.func @transform_2(%arg0: i32, %arg1: memref<6xi32, #tpu.memory_space<smem>>) -> i32 {
    %c0_i32 = arith.constant 0 : i32
    %c0_i32_0 = arith.constant 0 : i32
    return %c0_i32 : i32
  }
  func.func @transform_3(%arg0: i32, %arg1: memref<6xi32, #tpu.memory_space<smem>>) -> (i32, i32) {
    %c0_i32 = arith.constant 0 : i32
    %c0_i32_0 = arith.constant 0 : i32
    return %c0_i32, %arg0 : i32, i32
  }
  func.func @transform_4(%arg0: i32, %arg1: memref<6xi32, #tpu.memory_space<smem>>) -> (i32, i32) {
    %c0_i32 = arith.constant 0 : i32
    %c0_i32_0 = arith.constant 0 : i32
    return %c0_i32, %arg0 : i32, i32
  }
  func.func @transform_5(%arg0: i32, %arg1: memref<6xi32, #tpu.memory_space<smem>>) -> (i32, i32) {
    %c0_i32 = arith.constant 0 : i32
    %c0_i32_0 = arith.constant 0 : i32
    return %c0_i32, %arg0 : i32, i32
  }
}

</mosaic_0001>

<llo_original>
// kernel: tpu_custom_call.1
$region0: #{tpu_custom_call.1}
  #allocation0 [shape = 'u32[]', space=smem, size = 0x4, offset = 0x4, fixed_abs, tag = 'smem constant byte address 0x4 - core index']
  #allocation1 [shape = 'u32[72,128]{1,0:T(1,128)}', space=vmem, size = 0x9000, scoped, tag = 'internal scratch']
  #allocation2 [shape = 's32[1]{0}', space=sflag, size = 0x4, scoped, tag = 'scoped memory for tpu_custom_call.1']
  #allocation3 [shape = 'u8[512]{0}', space=smem, size = 0x200, scoped, tag = 'prefetched SMEM operand 0']
  %s0 = inlined_call_operand.vmem [shape: s32[6], index: 0, kind: input, shape index: {}]
  %s1 = inlined_call_operand.vmem [shape: f32[2,28,8], index: 1, kind: input, shape index: {}]
  %s2 = inlined_call_operand.vmem [shape: f32[4], index: 2, kind: input, shape index: {}]
  %s3 = inlined_call_operand.vmem [shape: f32[6], index: 3, kind: input, shape index: {}]
  %s4 = inlined_call_operand.hbm [shape: f32[4,256], index: 4, kind: output, shape index: {0}]
  %s5 = inlined_call_operand.hbm [shape: f32[24,256], index: 5, kind: output, shape index: {1}]
  %s6 = inlined_call_operand.hbm [shape: s8[2,256], index: 6, kind: output, shape index: {2}]
  %7 = xla_tuple %s4, %s5, %s6
  %s8 = sld [smem:[#allocation0]]
  $region69: #{tpu_custom_call.1} parent=0
    _
  %s10 = ssub.s32 1, %s8
  %s11 = scalar_select 0, %s10, %s8
  %s13 = sshll.u32 %s0, 4
  %s14 = int_to_ptr.vmem [resolvable:$true] %s13
  %16 = dma.vmem_to_smem %s14, 16, [#allocation3], [#allocation2]
  %18 = dma.done [#allocation2], 16
  %19 = sfence
  $region1: #{tpu_custom_call.1} parent=0
    #allocation4 [shape = 'u8[512]{0}', space=smem, size = 0x200, scoped, tag = 'input window, operand 2, single buffered']
    #allocation5 [shape = 's32[2]{0}', space=sflag, size = 0x8, scoped, tag = 'scoped memory for tpu_custom_call.1']
    #allocation6 [shape = 's32[2]{0}', space=sflag, size = 0x8, scoped, tag = 'scoped memory for tpu_custom_call.1']
    #allocation7 [shape = 'u8[512]{0}', space=smem, size = 0x200, scoped, tag = 'input window, operand 3, single buffered']
    #allocation8 [shape = 's32[1]{0}', space=sflag, size = 0x4, scoped, tag = 'scoped memory for tpu_custom_call.1']
    #allocation9 [shape = 'u8[4096]{0}', space=vmem, size = 0x1000, scoped, tag = 'output window, operand 0']
    #allocation10 [shape = 'u8[24576]{0}', space=vmem, size = 0x6000, scoped, tag = 'output window, operand 1']
    #allocation11 [shape = 's32[2]{0}', space=sflag, size = 0x8, scoped, tag = 'scoped memory for tpu_custom_call.1']
    #allocation12 [shape = 'u8[1024]{0}', space=vmem, size = 0x400, scoped, tag = 'output window, operand 2']
    %20 = vsyncpa [#allocation6], 0
    %21 = vsyncpa [#allocation8], 0
    %22 = vsyncpa [#allocation5], 0
    %s23 = scalar_lea.sflag [#allocation5], 1
    %24 = vsyncpa %s23, 0
    %25 = vsyncpa [#allocation11], 0
    %s26 = scalar_lea.sflag [#allocation11], 1
    %27 = vsyncpa %s26, 0
    loop: start=0, step=1, limit=4
    $region2: #{tpu_custom_call.1} parent=1 // loop_pre_header
      _
    $region3: #{tpu_custom_call.1} parent=1 // loop_header
      %s29 = sphi 0, %s33
      %p30 = scmp.ge.s32.totalorder %s29, 4
      %s43 = sphi 0, %s45
      %s46 = sphi 0, %s43
      %s47 = sphi 0, %s46
      %s63 = sphi 0, %s47
      %s67 = sphi 0, %s67
      %s69 = sphi 0, %s67
      %s70 = sphi 0, %s69
      %s84 = sphi 0, %s70
      %s88 = sphi 0, %s88
      %s90 = sphi 0, %s88
      %s91 = sphi 0, %s90
      %s105 = sphi 0, %s91
      %s111 = sphi 0, %s113
      %s114 = sphi 0, %s111
      %s115 = sphi 0, %s114
      %s131 = sphi 0, %s115
      %s137 = sphi 0, %s139
      %s140 = sphi 0, %s137
      %s141 = sphi 0, %s140
      %s157 = sphi 0, %s141
      %s163 = sphi 0, %s165
      %s166 = sphi 0, %s163
      %s167 = sphi 0, %s166
      %s183 = sphi 0, %s167
    $region4: #{tpu_custom_call.1} parent=1 // loop_header_branch
      %32 = sbr.rel (%p30) target = $region8
    $region5: #{tpu_custom_call.1} parent=1 // loop_body
      %s34 = ssub.s32 %s29, 1
      %s35 = ssub.s32 %s29, 2
      %s36 = sadd.s32 %s29, 1
      %s37 = smul.u32 %s29, 3
      %s38 = sld [smem:[#allocation3 + %s37]]
      %s39 = smul.u32 %s36, 3
      %s40 = sld [smem:[#allocation3 + %s39]]
      %s41 = ssub.s32 %s38, %s40
      %p42 = scmp.eq.s32.totalorder %s41, 0
      %s44 = sadd.s32 %s43, 1
      %s45 = scalar_select %p42, %s43, %s44
      %p48 = pneg %p42
      %p49 = scmp.eq.s32.totalorder %s29, 1
      %p50 = por %p48, %p49
      %p51 = scmp.ne.s32.totalorder %s43, %s46
      %p52 = scmp.eq.s32.totalorder %s29, 0
      %p53 = por %p51, %p52
      %p54 = scmp.ne.s32.totalorder %s43, %s46
      %p55 = scmp.eq.s32.totalorder %s34, 1
      %p56 = por %p54, %p55
      %p57 = scmp.ne.s32.totalorder %s46, %s47
      %p58 = scmp.eq.s32.totalorder %s34, 0
      %p59 = por %p57, %p58
      %p60 = scmp.ne.s32.totalorder %s46, %s47
      %p61 = scmp.eq.s32.totalorder %s35, 1
      %p62 = por %p60, %p61
      %p64 = scmp.ne.s32.totalorder %s47, %s63
      %p65 = scmp.eq.s32.totalorder %s35, 0
      %p66 = por %p64, %p65
      %s68 = sadd.s32 %s67, 1
      %p71 = scmp.eq.s32.totalorder %s29, 1
      %p72 = scmp.ne.s32.totalorder %s67, %s69
      %p73 = scmp.eq.s32.totalorder %s29, 0
      %p74 = por %p72, %p73
      %p75 = scmp.ne.s32.totalorder %s67, %s69
      %p76 = scmp.eq.s32.totalorder %s34, 1
      %p77 = por %p75, %p76
      %p78 = scmp.ne.s32.totalorder %s69, %s70
      %p79 = scmp.eq.s32.totalorder %s34, 0
      %p80 = por %p78, %p79
      %p81 = scmp.ne.s32.totalorder %s69, %s70
      %p82 = scmp.eq.s32.totalorder %s35, 1
      %p83 = por %p81, %p82
      %p85 = scmp.ne.s32.totalorder %s70, %s84
      %p86 = scmp.eq.s32.totalorder %s35, 0
      %p87 = por %p85, %p86
      %s89 = sadd.s32 %s88, 1
      %p92 = scmp.eq.s32.totalorder %s29, 1
      %p93 = scmp.ne.s32.totalorder %s88, %s90
      %p94 = scmp.eq.s32.totalorder %s29, 0
      %p95 = por %p93, %p94
      %p96 = scmp.ne.s32.totalorder %s88, %s90
      %p97 = scmp.eq.s32.totalorder %s34, 1
      %p98 = por %p96, %p97
      %p99 = scmp.ne.s32.totalorder %s90, %s91
      %p100 = scmp.eq.s32.totalorder %s34, 0
      %p101 = por %p99, %p100
      %p102 = scmp.ne.s32.totalorder %s90, %s91
      %p103 = scmp.eq.s32.totalorder %s35, 1
      %p104 = por %p102, %p103
      %p106 = scmp.ne.s32.totalorder %s91, %s105
      %p107 = scmp.eq.s32.totalorder %s35, 0
      %p108 = por %p106, %p107
      %s109 = ssub.s32 %s29, %s36
      %p110 = scmp.eq.s32.totalorder %s109, 0
      %s112 = sadd.s32 %s111, 1
      %s113 = scalar_select %p110, %s111, %s112
      %p116 = pneg %p110
      %p117 = scmp.eq.s32.totalorder %s29, 1
      %p118 = por %p116, %p117
      %p119 = scmp.ne.s32.totalorder %s111, %s114
      %p120 = scmp.eq.s32.totalorder %s29, 0
      %p121 = por %p119, %p120
      %p122 = scmp.ne.s32.totalorder %s111, %s114
      %p123 = scmp.eq.s32.totalorder %s34, 1
      %p124 = por %p122, %p123
      %p125 = scmp.ne.s32.totalorder %s114, %s115
      %p126 = scmp.eq.s32.totalorder %s34, 0
      %p127 = por %p125, %p126
      %p128 = scmp.ne.s32.totalorder %s114, %s115
      %p129 = scmp.eq.s32.totalorder %s35, 1
      %p130 = por %p128, %p129
      %p132 = scmp.ne.s32.totalorder %s115, %s131
      %p133 = scmp.eq.s32.totalorder %s35, 0
      %p134 = por %p132, %p133
      %s135 = ssub.s32 %s29, %s36
      %p136 = scmp.eq.s32.totalorder %s135, 0
      %s138 = sadd.s32 %s137, 1
      %s139 = scalar_select %p136, %s137, %s138
      %p142 = pneg %p136
      %p143 = scmp.eq.s32.totalorder %s29, 1
      %p144 = por %p142, %p143
      %p145 = scmp.ne.s32.totalorder %s137, %s140
      %p146 = scmp.eq.s32.totalorder %s29, 0
      %p147 = por %p145, %p146
      %p148 = scmp.ne.s32.totalorder %s137, %s140
      %p149 = scmp.eq.s32.totalorder %s34, 1
      %p150 = por %p148, %p149
      %p151 = scmp.ne.s32.totalorder %s140, %s141
      %p152 = scmp.eq.s32.totalorder %s34, 0
      %p153 = por %p151, %p152
      %p154 = scmp.ne.s32.totalorder %s140, %s141
      %p155 = scmp.eq.s32.totalorder %s35, 1
      %p156 = por %p154, %p155
      %p158 = scmp.ne.s32.totalorder %s141, %s157
      %p159 = scmp.eq.s32.totalorder %s35, 0
      %p160 = por %p158, %p159
      %s161 = ssub.s32 %s29, %s36
      %p162 = scmp.eq.s32.totalorder %s161, 0
      %s164 = sadd.s32 %s163, 1
      %s165 = scalar_select %p162, %s163, %s164
      %p168 = pneg %p162
      %p169 = scmp.eq.s32.totalorder %s29, 1
      %p170 = por %p168, %p169
      %p171 = scmp.ne.s32.totalorder %s163, %s166
      %p172 = scmp.eq.s32.totalorder %s29, 0
      %p173 = por %p171, %p172
      %p174 = scmp.ne.s32.totalorder %s163, %s166
      %p175 = scmp.eq.s32.totalorder %s34, 1
      %p176 = por %p174, %p175
      %p177 = scmp.ne.s32.totalorder %s166, %s167
      %p178 = scmp.eq.s32.totalorder %s34, 0
      %p179 = por %p177, %p178
      %p180 = scmp.ne.s32.totalorder %s166, %s167
      %p181 = scmp.eq.s32.totalorder %s35, 1
      %p182 = por %p180, %p181
      %p184 = scmp.ne.s32.totalorder %s167, %s183
      %p185 = scmp.eq.s32.totalorder %s35, 0
      %p186 = por %p184, %p185
      %p187 = scmp.le.s32.totalorder 1, %s29
      %p188 = scmp.lt.s32.totalorder %s29, 3
      %p189 = pnand %p187, %p188
      %p190 = pneg %p189
      // Predicated region
      $region9: #{tpu_custom_call.1} parent=5 // pred_check
        _
      $region10: #{tpu_custom_call.1} parent=5 // pred_check_branch
        %192 = sbr.rel (%p189) target = $region12
      $region11: #{tpu_custom_call.1} parent=5 // pred_region
        %s193 = ssub.s32 %s29, 1
        // Predicated region
        $region13: #{tpu_custom_call.1} parent=11 // pred_check
          %p194 = pneg %p80
        $region14: #{tpu_custom_call.1} parent=11 // pred_check_branch
          %196 = sbr.rel (%p194) target = $region16
        $region15: #{tpu_custom_call.1} parent=11 // pred_region
          %198 = vsyncadd [#allocation6], 0
          %s200 = sshll.u32 %s2, 4
          %s201 = int_to_ptr.vmem [resolvable:$true] %s200
          %203 = dma.vmem_to_smem %s201, 16, [#allocation4], [#allocation6]
        $region16: #{tpu_custom_call.1} parent=11 // pred_fallthru
          _
        // Predicated region
        $region17: #{tpu_custom_call.1} parent=11 // pred_check
          %p204 = pneg %p101
        $region18: #{tpu_custom_call.1} parent=11 // pred_check_branch
          %206 = sbr.rel (%p204) target = $region20
        $region19: #{tpu_custom_call.1} parent=11 // pred_region
          %208 = vsyncadd [#allocation8], 0
          %s210 = sshll.u32 %s3, 4
          %s211 = int_to_ptr.vmem [resolvable:$true] %s210
          %213 = dma.vmem_to_smem %s211, 16, [#allocation7], [#allocation8]
        $region20: #{tpu_custom_call.1} parent=11 // pred_fallthru
          _
      $region12: #{tpu_custom_call.1} parent=5 // pred_fallthru
        _
      %p214 = scmp.lt.s32.totalorder %s29, 2
      // Predicated region
      $region21: #{tpu_custom_call.1} parent=5 // pred_check
        %p215 = pneg %p214
      $region22: #{tpu_custom_call.1} parent=5 // pred_check_branch
        %217 = sbr.rel (%p215) target = $region24
      $region23: #{tpu_custom_call.1} parent=5 // pred_region
        // Predicated region
        $region25: #{tpu_custom_call.1} parent=23 // pred_check
          %p218 = pneg %p53
        $region26: #{tpu_custom_call.1} parent=23 // pred_check_branch
          %220 = sbr.rel (%p218) target = $region28
        $region27: #{tpu_custom_call.1} parent=23 // pred_region
          %s221 = smul.u32 %s29, 3
          %s222 = sld [smem:[#allocation3 + %s221]]
          %p223 = scmp.lt.s32.totalorder %s222, 1
          %s224 = scalar_select %p223, %s222, 1
          %s225 = smul.addr %s224, 4
          %s226 = smul.addr %s225, 8
          %s227 = scalar_lea.vmem %s1, %s226
          %s228 = smul.u32 %s29, 3
          %s229 = sld [smem:[#allocation3 + %s228]]
        $region28: #{tpu_custom_call.1} parent=23 // pred_fallthru
          _
      $region24: #{tpu_custom_call.1} parent=5 // pred_fallthru
        _
      %p230 = scmp.le.s32.totalorder 1, %s29
      %p231 = scmp.lt.s32.totalorder %s29, 3
      %p232 = pnand %p230, %p231
      %p233 = pneg %p232
      // Predicated region
      $region29: #{tpu_custom_call.1} parent=5 // pred_check
        _
      $region30: #{tpu_custom_call.1} parent=5 // pred_check_branch
        %235 = sbr.rel (%p232) target = $region32
      $region31: #{tpu_custom_call.1} parent=5 // pred_region
        %s236 = ssub.s32 %s29, 1
        // Predicated region
        $region33: #{tpu_custom_call.1} parent=31 // pred_check
          %p237 = pneg %p80
        $region34: #{tpu_custom_call.1} parent=31 // pred_check_branch
          %239 = sbr.rel (%p237) target = $region36
        $region35: #{tpu_custom_call.1} parent=31 // pred_region
          %241 = dma.done [#allocation6], 16
        $region36: #{tpu_custom_call.1} parent=31 // pred_fallthru
          _
        // Predicated region
        $region37: #{tpu_custom_call.1} parent=31 // pred_check
          %p242 = pneg %p101
        $region38: #{tpu_custom_call.1} parent=31 // pred_check_branch
          %244 = sbr.rel (%p242) target = $region40
        $region39: #{tpu_custom_call.1} parent=31 // pred_region
          %246 = dma.done [#allocation8], 16
        $region40: #{tpu_custom_call.1} parent=31 // pred_fallthru
          _
        %247 = sfence
        %s248 = smul.u32 %s34, 3
        %s249 = sld [smem:[#allocation3 + %s248]]
        %p250 = scmp.lt.s32.totalorder %s249, 1
        %s251 = scalar_select %p250, %s249, 1
        %s252 = smul.addr %s251, 4
        %s253 = smul.addr %s252, 8
        %s254 = scalar_lea.vmem %s1, %s253
        %p255 = pneg %p59
        %p256 = pneg %p56
        %p257 = pneg %p80
        %p258 = pneg %p77
        %p259 = pneg %p101
        %p260 = pneg %p98
        %p261 = pneg %p127
        %p262 = pneg %p124
        %s263 = sand.u32 %s114, 1
        %s264 = scalar_lea.sflag [#allocation5], %s263
        %s265 = sand.u32 %s114, 1
        %s266 = smul.addr %s265, 4
        %s267 = scalar_lea.vmem [#allocation9], %s266
        %p268 = pneg %p153
        %p269 = pneg %p150
        %s270 = sand.u32 %s34, 1
        %s271 = scalar_lea.sflag [#allocation11], %s270
        %s272 = sand.u32 %s140, 1
        %s273 = smul.addr %s272, 24
        %s274 = scalar_lea.vmem [#allocation10], %s273
        %p275 = pneg %p179
        %p276 = pneg %p176
        %s277 = sand.u32 %s34, 1
        %s278 = scalar_lea.sflag [#allocation11], %s277
        %s279 = sand.u32 %s166, 1
        %s280 = scalar_lea.vmem [#allocation12], %s279
        %s281 = smul.u32 %s34, 3
        %s282 = sld [smem:[#allocation3 + %s281]]
        %p283 = scmp.lt.s32.totalorder %s282, 1
        %s284 = scalar_select %p283, %s282, 1
        %s285 = smul.addr %s284, 4
        %s286 = smul.addr %s285, 8
        %s287 = scalar_lea.vmem %s1, %s286
        %s288 = smul.u32 %s34, 3
        %s289 = sld [smem:[#allocation3 + %s288]]
        %s290 = smul.u32 %s34, 3
        %s291 = sadd.s32 %s290, 1
        %s292 = sld [smem:[#allocation3 + %s291]]
        %s293 = sadd.s32 %s290, 2
        %s294 = sld [smem:[#allocation3 + %s293]]
        %s295 = smul.u32 %s34, 2
        %s296 = sld [smem:[#allocation4 + %s295]]
        %s297 = sadd.s32 %s295, 1
        %s298 = sld [smem:[#allocation4 + %s297]]
        %v299 = vld [vmem:[%s287] sm:$0xff]
        %v300 = vld [vmem:[%s287 + $0x8] sm:$0xff]
        %v301 = vld [vmem:[%s287 + $0x10] sm:$0xff]
        %v302 = vld [vmem:[%s287 + $0x18] sm:$0xf]
        %v303 = vlaneseq
        %v304 = vand.u32 %v303, 127
        %v305 = vstv %s292
        %v306 = vadd.s32 %v305, %v304
        %v307 = vcvt.s32.f32 %v306
        %v308 = vmul.f32 %v307, 0.16666667
        %v309 = vfloor.f32 %v308
        %v310 = vcvt.f32.s32.to.zero.pseudo %v309
        %v311 = vmul.u32 %v310, 6
        %v312 = vsub.s32 %v306, %v311
        %vm313 = vcmp.lt.s32.totalorder %v312, 0
        %v314 = vsub.s32 %v310, 1
        %v315 = vsel %vm313, %v314, %v310
        %v316 = vadd.s32 %v312, 6
        %v317 = vsel %vm313, %v316, %v312
        %vm318 = vcmp.ge.s32.totalorder %v317, 6
        %v319 = vadd.s32 %v315, 1
        %v320 = vsel %vm318, %v319, %v315
        %v321 = vsub.s32 %v317, 6
        %v322 = vsel %vm318, %v321, %v317
        %v323 = vcvt.s32.f32 %v320
        %v324 = vstv %s298
        %v325 = vmul.f32 %v323, %v324
        %v326 = vfloor.f32 %v325
        %v327 = vcvt.f32.s32.to.zero.pseudo %v326
        %v328 = vstv %s294
        %v329 = vmul.u32 %v327, %v328
        %v330 = vsub.s32 %v320, %v329
        %vm331 = vcmp.lt.s32.totalorder %v330, 0
        %v332 = vsub.s32 %v327, 1
        %v333 = vsel %vm331, %v332, %v327
        %v334 = vadd.s32 %v330, %v328
        %v335 = vsel %vm331, %v334, %v330
        %vm336 = vcmp.ge.s32.totalorder %v335, %v328
        %v337 = vadd.s32 %v333, 1
        %v338 = vsel %vm336, %v337, %v333
        %v339 = vsub.s32 %v335, %v328
        %v340 = vsel %vm336, %v339, %v335
        %v341 = vcvt.s32.f32 %v340
        %v342 = vadd.f32 %v341, 0.5
        %v343 = vstv %s296
        %v344 = vmul.f32 %v342, %v343
        %v345 = vcvt.s32.f32 %v338
        %v346 = vadd.f32 %v345, 0.5
        %v347 = vmul.f32 %v346, %v343
        %v348 = vlaneseq
        %v349 = vshrl.u32 %v348, 7
        %vm350 = vcmp.eq.s32.totalorder %v349, %v322
        %v351 = vsel %vm350, 1, 0
        %v352 = vcvt.s32.f32 %v351
        %vm353 = vcmask 64512
        %v355 = vsel %vm353, %v299, 0
        %v358 = vsel %vm353, %v300, 0
        %v361 = vsel %vm353, %v301, 0
        %v364 = vsel %vm353, %v302, 0
        %366 = vmatpush.msra.mxu0 0.0
        %367 = vmatpush.msra.mxu0 0.0
        %368 = vmatpush.msra.mxu0 0.0
        %369 = vmatpush.msra.mxu0 0.0
        %370 = vmatpush.msra.mxu0 0.0
        %371 = vmatpush.msra.mxu0 0.0
        %372 = vmatpush.msra.mxu0 0.0
        %373 = vmatpush.msra.mxu0 0.0
        %374 = vmatpush.msra.mxu0 0.0
        %375 = vmatpush.msra.mxu0 0.0
        %376 = vmatpush.msra.mxu0 0.0
        %377 = vmatpush.msra.mxu0 0.0
        %378 = vmatpush.msra.mxu0 0.0
        %379 = vmatpush.msra.mxu0 0.0
        %380 = vmatpush.msra.mxu0 0.0
        %381 = vmatpush.msra.mxu0 %v352
        %382 = vmatmul.f32.gmra.mxu0 %v355
        %v383 = vpop.f32.mrf.mxu0
        %v384 = vadd.f32 0.0, %v383
        %385 = vmatmul.f32.gmra.mxu0 %v358
        %v386 = vpop.f32.mrf.mxu0
        %v387 = vadd.f32 0.0, %v386
        %388 = vmatmul.f32.gmra.mxu0 %v361
        %v389 = vpop.f32.mrf.mxu0
        %v390 = vadd.f32 0.0, %v389
        %391 = vmatmul.f32.gmra.mxu0 %v364
        %v392 = vpop.f32.mrf.mxu0
        %v393 = vadd.f32 0.0, %v392
        %394 = vdwg.mxu0
        %v395 = vand.u32 %v349, 1
        %vm396 = vcmp.eq.s32.totalorder %v395, 0
        %v397 = vsel %vm396, %v344, %v347
        %v398 = vadd.f32 %v384, %v397
        %399 = vst [vmem:[%s267] sm:$0xf] %v398
        %400 = vst [vmem:[%s274 - $0x4] sm:$0xf0] %v384
        %401 = vst [vmem:[%s274 + $0x4] sm:$0xff] %v387
        %402 = vst [vmem:[%s274 + $0xc] sm:$0xff] %v390
        %403 = vst [vmem:[%s274 + $0x14] sm:$0xf] %v393
        %v405 = vrot.slane %v398, 2
        %v407 = vadd.f32 %v398, %v405
        %v408 = vmul.f32 %v407, 0.5
        %s409 = sld [smem:[#allocation7]]
        %s410 = sld [smem:[#allocation7 + $0x1]]
        %s411 = sld [smem:[#allocation7 + $0x2]]
        %v413 = vrot.slane %v384, 4
        %v415 = vmul.f32 %v408, %v413
        %v416 = vstv %s411
        %v417 = vmul.f32 %v416, %v384
        %v419 = vrot.slane %v417, 4
        %v421 = vsub.f32 %v415, %v419
        %v422 = vstv %s409
        %v423 = vrcp.pop %v422
        %v424 = vmul.f32 %v422, %v423
        %v425 = vsub.f32 1.0, %v424
        %v426 = vmul.f32 %v423, %v425
        %v427 = vadd.f32 %v423, %v426
        %vm428 = vweird.f32 %v422
        %vm429 = vweird.f32 %v423
        %vm430 = vmor %vm428, %vm429
        %v431 = vsel %vm430, %v423, %v427
        %v432 = vand.u32 2147483647, %v422
        %vm433 = vcmp.eq.f32.partialorder %v432, 8.507059e+37
        %v434 = vand.u32 %v422, 2147483648
        %v435 = vor.u32 1.1754944e-38, %v434
        %v436 = vsel %vm433, %v435, %v431
        %v437 = vmul.f32 %v421, %v436
        %v438 = vrot.slane %v384, 3
        %v440 = vmul.f32 %v408, %v438
        %v441 = vstv %s410
        %v442 = vmul.f32 %v441, %v384
        %v444 = vrot.slane %v442, 3
        %v446 = vsub.f32 %v440, %v444
        %v447 = vmul.f32 %v446, %v436
        %vm448 = vcmp.gt.f32.partialorder %v447, -0.5
        %vm449 = vcmp.lt.f32.partialorder %v447, 1.8
        %vm450 = vmand %vm448, %vm449
        %v451 = vand.u32 2147483647, %v437
        %vm452 = vcmp.lt.f32.partialorder %v451, 40.0
        %v453 = vsel %vm452, 1, 0
        %v454 = vrot.slane %v453, 7
        %vm455 = vcmp.ne.s32.totalorder %v454, 0
        %vm456 = vmand %vm450, %vm455
        %v457 = vmul.f32 %v408, %v390
        %v458 = vmul.f32 %v416, %v390
        %v459 = vsub.f32 %v457, %v458
        %v460 = vmul.f32 %v459, %v436
        %v462 = vrot.slane %v390, 7
        %v464 = vmul.f32 %v408, %v462
        %v465 = vmul.f32 %v441, %v390
        %v467 = vrot.slane %v465, 7
        %v469 = vsub.f32 %v464, %v467
        %v470 = vmul.f32 %v469, %v436
        %vm471 = vcmp.gt.f32.partialorder %v470, -0.5
        %vm472 = vcmp.lt.f32.partialorder %v470, 1.8
        %vm473 = vmand %vm471, %vm472
        %v474 = vand.u32 2147483647, %v460
        %vm475 = vcmp.lt.f32.partialorder %v474, 40.0
        %v476 = vsel %vm475, 1, 0
        %v477 = vrot.slane %v476, 7
        %vm478 = vcmp.ne.s32.totalorder %v477, 0
        %vm479 = vmand %vm473, %vm478
        %vm480 = vmor %vm456, %vm479
        %v481 = vsel %vm480, 1, 0
        %s482 = sld [smem:[#allocation7 + $0x3]]
        %s483 = sld [smem:[#allocation7 + $0x4]]
        %s484 = sld [smem:[#allocation7 + $0x5]]
        %v485 = vstv %s484
        %v486 = vmul.f32 %v485, %v384
        %v488 = vrot.slane %v486, 4
        %v490 = vsub.f32 %v415, %v488
        %v491 = vstv %s482
        %v492 = vrcp.pop %v491
        %v493 = vmul.f32 %v491, %v492
        %v494 = vsub.f32 1.0, %v493
        %v495 = vmul.f32 %v492, %v494
        %v496 = vadd.f32 %v492, %v495
        %vm497 = vweird.f32 %v491
        %vm498 = vweird.f32 %v492
        %vm499 = vmor %vm497, %vm498
        %v500 = vsel %vm499, %v492, %v496
        %v501 = vand.u32 2147483647, %v491
        %vm502 = vcmp.eq.f32.partialorder %v501, 8.507059e+37
        %v503 = vand.u32 %v491, 2147483648
        %v504 = vor.u32 1.1754944e-38, %v503
        %v505 = vsel %vm502, %v504, %v500
        %v506 = vmul.f32 %v490, %v505
        %v507 = vstv %s483
        %v508 = vmul.f32 %v507, %v384
        %v510 = vrot.slane %v508, 3
        %v512 = vsub.f32 %v440, %v510
        %v513 = vmul.f32 %v512, %v505
        %vm514 = vcmp.gt.f32.partialorder %v513, -0.5
        %vm515 = vcmp.lt.f32.partialorder %v513, 1.8
        %vm516 = vmand %vm514, %vm515
        %v517 = vand.u32 2147483647, %v506
        %vm518 = vcmp.lt.f32.partialorder %v517, 40.0
        %v519 = vsel %vm518, 1, 0
        %v520 = vrot.slane %v519, 7
        %vm521 = vcmp.ne.s32.totalorder %v520, 0
        %vm522 = vmand %vm516, %vm521
        %v523 = vmul.f32 %v485, %v390
        %v524 = vsub.f32 %v457, %v523
        %v525 = vmul.f32 %v524, %v505
        %v526 = vmul.f32 %v507, %v390
        %v528 = vrot.slane %v526, 7
        %v530 = vsub.f32 %v464, %v528
        %v531 = vmul.f32 %v530, %v505
        %vm532 = vcmp.gt.f32.partialorder %v531, -0.5
        %vm533 = vcmp.lt.f32.partialorder %v531, 1.8
        %vm534 = vmand %vm532, %vm533
        %v535 = vand.u32 2147483647, %v525
        %vm536 = vcmp.lt.f32.partialorder %v535, 40.0
        %v537 = vsel %vm536, 1, 0
        %v538 = vrot.slane %v537, 7
        %vm539 = vcmp.ne.s32.totalorder %v538, 0
        %vm540 = vmand %vm534, %vm539
        %vm541 = vmor %vm522, %vm540
        %v542 = vsel %vm541, 1, 0
        %v543 = vrot.slane %v481, 1
        %vm544 = vcmask 1040384
        %v545 = vsel %vm544, %v543, %v542
        %v546 = vpack.c.b16 %v545, %v545
        %v547 = vpack.c.b8 %v546, %v546
        %vm548 = vcmask 1040384
        %vm549 = vsmask.f32 256
        %vm550 = vmand %vm548, %vm549
        %v551 = vld [vmem:[%s280] sm:$0x1]
        %v552 = vsel %vm550, %v547, %v551
        %553 = vst [vmem:[%s280] sm:$0x1] %v552
        %s554 = sand.u32 %s114, 1
        %s555 = scalar_lea.sflag [#allocation5], %s554
        %s556 = sand.u32 %s114, 1
        %s557 = smul.addr %s556, 4
        %s558 = scalar_lea.vmem [#allocation9], %s557
        %s559 = sand.u32 %s34, 1
        %s560 = scalar_lea.sflag [#allocation11], %s559
        %s561 = sand.u32 %s140, 1
        %s562 = smul.addr %s561, 24
        %s563 = scalar_lea.vmem [#allocation10], %s562
        %s564 = sand.u32 %s34, 1
        %s565 = scalar_lea.sflag [#allocation11], %s564
        %s566 = sand.u32 %s166, 1
        %s567 = scalar_lea.vmem [#allocation12], %s566
        // Predicated region
        $region41: #{tpu_custom_call.1} parent=31 // pred_check
          %p568 = pneg %p124
        $region42: #{tpu_custom_call.1} parent=31 // pred_check_branch
          %570 = sbr.rel (%p568) target = $region44
        $region43: #{tpu_custom_call.1} parent=31 // pred_region
          %572 = vsyncadd %s555, 0
          %s573 = smul.addr %s34, 4
          %s574 = scalar_lea.hbm %s4, %s573
          %s576 = sshll.u32 %s558, 4
          %s577 = int_to_ptr.vmem [resolvable:$true] %s576
          %s578 = sshll.u32 %s574, 4
          %s579 = int_to_ptr.hbm [resolvable:$true] %s578
          %581 = dma.vmem_to_hbm [thread:$0]  %s577, 64, %s579, %s555
        $region44: #{tpu_custom_call.1} parent=31 // pred_fallthru
          _
        // Predicated region
        $region45: #{tpu_custom_call.1} parent=31 // pred_check
          %p582 = pneg %p150
        $region46: #{tpu_custom_call.1} parent=31 // pred_check_branch
          %584 = sbr.rel (%p582) target = $region48
        $region47: #{tpu_custom_call.1} parent=31 // pred_region
          %586 = vsyncadd %s560, 0
          %s587 = smul.addr %s34, 8
          %s588 = scalar_lea.hbm %s5, %s587
          %s589 = sshll.u32 %s563, 4
          %s590 = int_to_ptr.vmem [resolvable:$true] %s589
          %s591 = sshll.u32 %s588, 4
          %s592 = int_to_ptr.hbm [resolvable:$true] %s591
          %597 = dma.vmem_to_hbm [thread:$0]  %s590, 384, %s592, %s560, 128, 256, 8
        $region48: #{tpu_custom_call.1} parent=31 // pred_fallthru
          _
        // Predicated region
        $region49: #{tpu_custom_call.1} parent=31 // pred_check
          %p598 = pneg %p176
        $region50: #{tpu_custom_call.1} parent=31 // pred_check_branch
          %600 = sbr.rel (%p598) target = $region52
        $region51: #{tpu_custom_call.1} parent=31 // pred_region
          %602 = vsyncadd %s565, 0
          %s603 = scalar_lea.hbm %s6, %s34
          %s605 = sshll.u32 %s567, 4
          %s606 = int_to_ptr.vmem [resolvable:$true] %s605
          %s607 = sshll.u32 %s603, 4
          %s608 = int_to_ptr.hbm [resolvable:$true] %s607
          %610 = dma.vmem_to_hbm [thread:$0]  %s606, 16, %s608, %s565
        $region52: #{tpu_custom_call.1} parent=31 // pred_fallthru
          _
      $region32: #{tpu_custom_call.1} parent=5 // pred_fallthru
        _
      %p611 = scmp.le.s32.totalorder 2, %s29
      // Predicated region
      $region53: #{tpu_custom_call.1} parent=5 // pred_check
        %p612 = pneg %p611
      $region54: #{tpu_custom_call.1} parent=5 // pred_check_branch
        %614 = sbr.rel (%p612) target = $region56
      $region55: #{tpu_custom_call.1} parent=5 // pred_region
        %s615 = ssub.s32 %s29, 2
        // Predicated region
        $region57: #{tpu_custom_call.1} parent=55 // pred_check
          %p616 = pneg %p130
        $region58: #{tpu_custom_call.1} parent=55 // pred_check_branch
          %618 = sbr.rel (%p616) target = $region60
        $region59: #{tpu_custom_call.1} parent=55 // pred_region
          %s619 = sand.u32 %s115, 1
          %s620 = scalar_lea.sflag [#allocation5], %s619
          %s621 = sand.u32 %s115, 1
          %s622 = smul.addr %s621, 4
          %s623 = scalar_lea.vmem [#allocation9], %s622
          %625 = dma.done %s620, 64
        $region60: #{tpu_custom_call.1} parent=55 // pred_fallthru
          _
        // Predicated region
        $region61: #{tpu_custom_call.1} parent=55 // pred_check
          %p626 = pneg %p156
        $region62: #{tpu_custom_call.1} parent=55 // pred_check_branch
          %628 = sbr.rel (%p626) target = $region64
        $region63: #{tpu_custom_call.1} parent=55 // pred_region
          %s629 = sand.u32 %s35, 1
          %s630 = scalar_lea.sflag [#allocation11], %s629
          %s631 = sand.u32 %s141, 1
          %s632 = smul.addr %s631, 24
          %s633 = scalar_lea.vmem [#allocation10], %s632
          %635 = dma.done %s630, 384
        $region64: #{tpu_custom_call.1} parent=55 // pred_fallthru
          _
        // Predicated region
        $region65: #{tpu_custom_call.1} parent=55 // pred_check
          %p636 = pneg %p182
        $region66: #{tpu_custom_call.1} parent=55 // pred_check_branch
          %638 = sbr.rel (%p636) target = $region68
        $region67: #{tpu_custom_call.1} parent=55 // pred_region
          %s639 = sand.u32 %s35, 1
          %s640 = scalar_lea.sflag [#allocation11], %s639
          %s641 = sand.u32 %s167, 1
          %s642 = scalar_lea.vmem [#allocation12], %s641
          %644 = dma.done %s640, 16
        $region68: #{tpu_custom_call.1} parent=55 // pred_fallthru
          _
      $region56: #{tpu_custom_call.1} parent=5 // pred_fallthru
        _
    $region6: #{tpu_custom_call.1} parent=1 // loop_footer
      %s33 = sadd.s32 1, %s29
    $region7: #{tpu_custom_call.1} parent=1 // loop_footer_branch
      %28 = sbr.rel target = $region3
    $region8: #{tpu_custom_call.1} parent=1 // loop_exit
      _
    %645 = vsyncpa [#allocation5], 1
    %s646 = scalar_lea.sflag [#allocation5], 1
    %647 = vsyncpa %s646, 1
    %648 = vsyncpa [#allocation11], 1
    %s649 = scalar_lea.sflag [#allocation11], 1
    %650 = vsyncpa %s649, 1
    %651 = vsyncpa [#allocation6], 1
    %s652 = scalar_lea.sflag [#allocation6], 1
    %653 = vsyncpa %s652, 1
    %654 = vsyncpa [#allocation8], 1

</llo_original>
